<compile_context>
chip_gen: v7x
topology: tpu7x:2x2x1
jax: 0.10.0
libtpu: 0.0.40
codegen_flags: <defaults>
</compile_context>

<pallas_src>
import jax
import jax.numpy as jnp
import numpy as np
from jax.experimental import pallas as pl
from jax.experimental.pallas import tpu as pltpu

# Tap order (dy, dx) matches the (Cout, ky, kx, Cin) weight reshape: t = (dy+1)*3 + (dx+1).
_TAPS = tuple((dy, dx) for dy in (-1, 0, 1) for dx in (-1, 0, 1))


def _make_kernel(B, W, HW):
    """Kernel closure over the static per-block geometry."""

    def kernel(x_ref, masks_ref, w1_ref, b1_ref, w2_ref, b2_ref, ws_ref, bs_ref, o_ref):
        masks = masks_ref[...]                       # (9, HW) f32 border masks, loaded once/step

        def im2col(img):                             # img: (C, HW) f32 -> (9*C, HW) f32
            pieces = []
            for t, (dy, dx) in enumerate(_TAPS):
                d = dy * W + dx                      # flat-index offset of this tap
                if d == 0:
                    rolled = img
                else:
                    # out[i] = img[i + d]  (circular); wrapped positions are zeroed by the mask.
                    rolled = pltpu.roll(img, shift=(-d) % HW, axis=1)
                    rolled = rolled * masks[t:t + 1, :]
                pieces.append(rolled)
            return jnp.concatenate(pieces, axis=0)   # (9*C, HW), rows ordered (tap, channel)

        for b in range(B):                           # static unroll over images in this block
            xb = x_ref[b]                            # (Cin, HW) f32, lane-dense

            # conv1 (+ folded BN1) -> ReLU : one (Cout, 9*Cin) @ (9*Cin, HW) bf16 MXU matmul
            p1 = im2col(xb).astype(jnp.bfloat16)
            h1 = jnp.maximum(
                jnp.dot(w1_ref[...], p1, preferred_element_type=jnp.float32) + b1_ref[...],
                0.0)                                 # (Cout, HW) f32

            # conv2 (+ folded BN2) -> ReLU
            p2 = im2col(h1).astype(jnp.bfloat16)
            h2 = jnp.maximum(
                jnp.dot(w2_ref[...], p2, preferred_element_type=jnp.float32) + b2_ref[...],
                0.0)                                 # (Cout, HW) f32

            # 1x1 projection shortcut (+ folded BN), residual add, final ReLU
            sc = jnp.dot(ws_ref[...], xb.astype(jnp.bfloat16),
                         preferred_element_type=jnp.float32) + bs_ref[...]
            o_ref[b] = jnp.maximum(h2 + sc, 0.0).astype(o_ref.dtype)

    return kernel


def residual_block_pallas(x_nchw, p, stride=1, images_per_step=None):
    """Forward pass of the PyTorch ResidualBlock (eval-mode BatchNorm), NCHW in / NCHW out."""
    assert stride == 1  # TODO(synk): strided convolutions not implemented
    N, Cin, H, W = x_nchw.shape
    Cout = p["w1"].shape[0]
    HW = H * W
    eps = 1e-5

    # ---- fold eval-mode BN into conv weights / per-channel bias (host side, once) ----
    s1 = p["g1"] / jnp.sqrt(p["v1"] + eps)
    s2 = p["g2"] / jnp.sqrt(p["v2"] + eps)
    ss = p["gs"] / jnp.sqrt(p["vs"] + eps)
    # (Cout, Cin, 3, 3) -> (Cout, ky, kx, Cin) -> (Cout, 9*Cin); stored bf16 for the MXU.
    w1 = (jnp.transpose(p["w1"], (0, 2, 3, 1)).reshape(Cout, 9 * Cin)
          * s1[:, None]).astype(jnp.bfloat16)
    w2 = (jnp.transpose(p["w2"], (0, 2, 3, 1)).reshape(Cout, 9 * Cout)
          * s2[:, None]).astype(jnp.bfloat16)
    ws = (p["ws"].reshape(Cout, Cin) * ss[:, None]).astype(jnp.bfloat16)
    b1 = (p["b1"] - p["m1"] * s1).reshape(Cout, 1).astype(jnp.float32)
    b2 = (p["b2"] - p["m2"] * s2).reshape(Cout, 1).astype(jnp.float32)
    bs = (p["bs"] - p["ms"] * ss).reshape(Cout, 1).astype(jnp.float32)

    # ---- per-tap border masks on the flat H*W axis, built once on the host (fully hoisted) ----
    hh, ww = np.meshgrid(np.arange(H), np.arange(W), indexing="ij")
    masks_np = np.stack(
        [((hh + dy >= 0) & (hh + dy < H) & (ww + dx >= 0) & (ww + dx < W)).astype(np.float32)
         for dy, dx in _TAPS], axis=0).reshape(9, HW)
    masks = jnp.asarray(masks_np)

    # ---- images per grid step: amortise per-step overhead but keep >=2 steps (v7x megacore) ----
    if images_per_step is None:
        B = 1
        for cand in range(min(8, max(1, N // 2)), 0, -1):
            if N % cand == 0:
                B = cand
                break
    else:
        B = int(images_per_step)
    assert N % B == 0

    # ---- lane-dense input: (N, Cin, H*W) is a free contiguous reshape in HBM ----
    x = x_nchw.reshape(N, Cin, HW).astype(jnp.float32)

    # ---- explicit VMEM budget (v7x: 64 MiB physical / 32 MiB scoped default) ----
    est = (2 * B * Cin * HW * 4 + 2 * B * Cout * HW * 4            # double-buffered x / out blocks
           + 2 * (w1.size + w2.size + ws.size) * 2                 # bf16 weights
           + 2 * 3 * Cout * 4 + 2 * 9 * HW * 4                     # biases + masks
           + (9 * Cin + 9 * Cout) * HW * 4                         # im2col patches (f32)
           + (Cin + 5 * Cout) * HW * 4)                            # misc intermediates
    vmem_limit = int(min(max(4 * est, 8 << 20), 32 << 20))

    def full(shape):
        return pl.BlockSpec(shape, lambda n: (0,) * len(shape))

    out_flat = pl.pallas_call(
        _make_kernel(B, W, HW),
        out_shape=jax.ShapeDtypeStruct((N, Cout, HW), jnp.float32),
        grid=(N // B,),
        in_specs=[
            pl.BlockSpec((B, Cin, HW), lambda n: (n, 0, 0)),       # x, lane-dense
            full((9, HW)),                                          # tap border masks
            full((Cout, 9 * Cin)), full((Cout, 1)),                 # conv1: BN-folded w (bf16), bias
            full((Cout, 9 * Cout)), full((Cout, 1)),                # conv2: BN-folded w (bf16), bias
            full((Cout, Cin)), full((Cout, 1)),                     # shortcut: BN-folded w (bf16), bias
        ],
        out_specs=pl.BlockSpec((B, Cout, HW), lambda n: (n, 0, 0)),
        compiler_params=pltpu.CompilerParams(
            dimension_semantics=("parallel",), vmem_limit_bytes=vmem_limit),
    )(x, masks, w1, b1, w2, b2, ws, bs)

    # (N, Cout, H*W) -> (N, Cout, H, W): contiguous reshape, no data movement.
    return out_flat.reshape(N, Cout, H, W)


def _reference(x, p):
    """Pure-JAX (lax.conv) reference of the PyTorch forward, eval-mode BN."""
    eps = 1e-5

    def bn(y, g, b, m, v):
        return ((y - m[None, :, None, None]) / jnp.sqrt(v[None, :, None, None] + eps)
                * g[None, :, None, None] + b[None, :, None, None])

    def conv(y, w, pad):
        return jax.lax.conv_general_dilated(
            y, w, (1, 1), ((pad, pad), (pad, pad)),
            dimension_numbers=("NCHW", "OIHW", "NCHW"))

    h = jax.nn.relu(bn(conv(x, p["w1"], 1), p["g1"], p["b1"], p["m1"], p["v1"]))
    h = jax.nn.relu(bn(conv(h, p["w2"], 1), p["g2"], p["b2"], p["m2"], p["v2"]))
    s = bn(conv(x, p["ws"], 0), p["gs"], p["bs"], p["ms"], p["vs"])
    return jax.nn.relu(h + s)


if __name__ == "__main__":
    Cin, Cout, N, H, W = 4, 8, 2, 16, 16
    key = jax.random.PRNGKey(0)
    ks = jax.random.split(key, 16)

    p = {
        "w1": 0.1 * jax.random.normal(ks[0], (Cout, Cin, 3, 3), jnp.float32),
        "g1": 1.0 + 0.1 * jax.random.normal(ks[1], (Cout,), jnp.float32),
        "b1": 0.1 * jax.random.normal(ks[2], (Cout,), jnp.float32),
        "m1": 0.1 * jax.random.normal(ks[3], (Cout,), jnp.float32),
        "v1": jax.random.uniform(ks[4], (Cout,), jnp.float32, 0.5, 1.5),
        "w2": 0.1 * jax.random.normal(ks[5], (Cout, Cout, 3, 3), jnp.float32),
        "g2": 1.0 + 0.1 * jax.random.normal(ks[6], (Cout,), jnp.float32),
        "b2": 0.1 * jax.random.normal(ks[7], (Cout,), jnp.float32),
        "m2": 0.1 * jax.random.normal(ks[8], (Cout,), jnp.float32),
        "v2": jax.random.uniform(ks[9], (Cout,), jnp.float32, 0.5, 1.5),
        "ws": 0.1 * jax.random.normal(ks[10], (Cout, Cin, 1, 1), jnp.float32),
        "gs": 1.0 + 0.1 * jax.random.normal(ks[11], (Cout,), jnp.float32),
        "bs": 0.1 * jax.random.normal(ks[12], (Cout,), jnp.float32),
        "ms": 0.1 * jax.random.normal(ks[13], (Cout,), jnp.float32),
        "vs": jax.random.uniform(ks[14], (Cout,), jnp.float32, 0.5, 1.5),
    }
    x = jax.random.normal(ks[15], (N, Cin, H, W), jnp.float32)

    out = jax.block_until_ready(residual_block_pallas(x, p))
    ref = jax.block_until_ready(_reference(x, p))

    assert out.shape == (N, Cout, H, W), out.shape
    # bf16 MXU operands (per review) -> widen tolerance vs. the f32 reference; not a bug.
    np.testing.assert_allclose(np.asarray(out), np.asarray(ref), rtol=3e-2, atol=3e-2)

    print("KERNEL_OK")
</pallas_src>

<mosaic_0001>
module attributes {stable_mosaic.version = 11 : i64} {
  func.func @kernel(%arg0: i32, %arg1: memref<1x4x256xf32, #tpu.memory_space<vmem>>, %arg2: memref<9x256xf32, #tpu.memory_space<vmem>>, %arg3: memref<8x36xbf16, #tpu.memory_space<vmem>>, %arg4: memref<8x1xf32, #tpu.memory_space<vmem>>, %arg5: memref<8x72xbf16, #tpu.memory_space<vmem>>, %arg6: memref<8x1xf32, #tpu.memory_space<vmem>>, %arg7: memref<8x4xbf16, #tpu.memory_space<vmem>>, %arg8: memref<8x1xf32, #tpu.memory_space<vmem>>, %arg9: memref<1x8x256xf32, #tpu.memory_space<vmem>>) attributes {dimension_semantics = [#tpu.dimension_semantics<parallel>], iteration_bounds = array<i64: 2>, scalar_prefetch = 0 : i64, scratch_operands = 0 : i64, tpu.core_type = #tpu.core_type<tc>, window_params = [{transform_indices = @transform_0, window_bounds = array<i64: 1, 4, 256>}, {pipeline_mode = #tpu.pipeline_mode<synchronous>, transform_indices = @transform_1, window_bounds = array<i64: 9, 256>}, {pipeline_mode = #tpu.pipeline_mode<synchronous>, transform_indices = @transform_2, window_bounds = array<i64: 8, 36>}, {pipeline_mode = #tpu.pipeline_mode<synchronous>, transform_indices = @transform_3, window_bounds = array<i64: 8, 1>}, {pipeline_mode = #tpu.pipeline_mode<synchronous>, transform_indices = @transform_4, window_bounds = array<i64: 8, 72>}, {pipeline_mode = #tpu.pipeline_mode<synchronous>, transform_indices = @transform_5, window_bounds = array<i64: 8, 1>}, {pipeline_mode = #tpu.pipeline_mode<synchronous>, transform_indices = @transform_6, window_bounds = array<i64: 8, 4>}, {pipeline_mode = #tpu.pipeline_mode<synchronous>, transform_indices = @transform_7, window_bounds = array<i64: 8, 1>}, {transform_indices = @transform_8, window_bounds = array<i64: 1, 8, 256>}]} {
    %c0 = arith.constant 0 : index
    %c0_0 = arith.constant 0 : index
    %0 = vector.load %arg2[%c0, %c0_0] : memref<9x256xf32, #tpu.memory_space<vmem>>, vector<9x256xf32>
    %c0_1 = arith.constant 0 : index
    %c0_2 = arith.constant 0 : index
    %c0_3 = arith.constant 0 : index
    %1 = vector.load %arg1[%c0_1, %c0_2, %c0_3] : memref<1x4x256xf32, #tpu.memory_space<vmem>>, vector<1x4x256xf32>
    %2 = vector.shape_cast %1 : vector<1x4x256xf32> to vector<4x256xf32>
    %c17_i32 = arith.constant 17 : i32
    %3 = tpu.dynamic_rotate %2 by %c17_i32 dim 1 : vector<4x256xf32>, i32 -> vector<4x256xf32>
    %4 = vector.extract_strided_slice %0 {offsets = [0, 0], sizes = [1, 256], strides = [1, 1]} : vector<9x256xf32> to vector<1x256xf32>
    %5 = vector.broadcast %4 : vector<1x256xf32> to vector<4x256xf32>
    %6 = arith.mulf %3, %5 : vector<4x256xf32>
    %c16_i32 = arith.constant 16 : i32
    %7 = tpu.dynamic_rotate %2 by %c16_i32 dim 1 : vector<4x256xf32>, i32 -> vector<4x256xf32>
    %8 = vector.extract_strided_slice %0 {offsets = [1, 0], sizes = [1, 256], strides = [1, 1]} : vector<9x256xf32> to vector<1x256xf32>
    %9 = vector.broadcast %8 : vector<1x256xf32> to vector<4x256xf32>
    %10 = arith.mulf %7, %9 : vector<4x256xf32>
    %c15_i32 = arith.constant 15 : i32
    %11 = tpu.dynamic_rotate %2 by %c15_i32 dim 1 : vector<4x256xf32>, i32 -> vector<4x256xf32>
    %12 = vector.extract_strided_slice %0 {offsets = [2, 0], sizes = [1, 256], strides = [1, 1]} : vector<9x256xf32> to vector<1x256xf32>
    %13 = vector.broadcast %12 : vector<1x256xf32> to vector<4x256xf32>
    %14 = arith.mulf %11, %13 : vector<4x256xf32>
    %c1_i32 = arith.constant 1 : i32
    %15 = tpu.dynamic_rotate %2 by %c1_i32 dim 1 : vector<4x256xf32>, i32 -> vector<4x256xf32>
    %16 = vector.extract_strided_slice %0 {offsets = [3, 0], sizes = [1, 256], strides = [1, 1]} : vector<9x256xf32> to vector<1x256xf32>
    %17 = vector.broadcast %16 : vector<1x256xf32> to vector<4x256xf32>
    %18 = arith.mulf %15, %17 : vector<4x256xf32>
    %c255_i32 = arith.constant 255 : i32
    %19 = tpu.dynamic_rotate %2 by %c255_i32 dim 1 : vector<4x256xf32>, i32 -> vector<4x256xf32>
    %20 = vector.extract_strided_slice %0 {offsets = [5, 0], sizes = [1, 256], strides = [1, 1]} : vector<9x256xf32> to vector<1x256xf32>
    %21 = vector.broadcast %20 : vector<1x256xf32> to vector<4x256xf32>
    %22 = arith.mulf %19, %21 : vector<4x256xf32>
    %c241_i32 = arith.constant 241 : i32
    %23 = tpu.dynamic_rotate %2 by %c241_i32 dim 1 : vector<4x256xf32>, i32 -> vector<4x256xf32>
    %24 = vector.extract_strided_slice %0 {offsets = [6, 0], sizes = [1, 256], strides = [1, 1]} : vector<9x256xf32> to vector<1x256xf32>
    %25 = vector.broadcast %24 : vector<1x256xf32> to vector<4x256xf32>
    %26 = arith.mulf %23, %25 : vector<4x256xf32>
    %c240_i32 = arith.constant 240 : i32
    %27 = tpu.dynamic_rotate %2 by %c240_i32 dim 1 : vector<4x256xf32>, i32 -> vector<4x256xf32>
    %28 = vector.extract_strided_slice %0 {offsets = [7, 0], sizes = [1, 256], strides = [1, 1]} : vector<9x256xf32> to vector<1x256xf32>
    %29 = vector.broadcast %28 : vector<1x256xf32> to vector<4x256xf32>
    %30 = arith.mulf %27, %29 : vector<4x256xf32>
    %c239_i32 = arith.constant 239 : i32
    %31 = tpu.dynamic_rotate %2 by %c239_i32 dim 1 : vector<4x256xf32>, i32 -> vector<4x256xf32>
    %32 = vector.extract_strided_slice %0 {offsets = [8, 0], sizes = [1, 256], strides = [1, 1]} : vector<9x256xf32> to vector<1x256xf32>
    %33 = vector.broadcast %32 : vector<1x256xf32> to vector<4x256xf32>
    %34 = arith.mulf %31, %33 : vector<4x256xf32>
    %35 = tpu.concatenate %6, %10, %14, %18, %2, %22, %26, %30, %34 in 0 : vector<4x256xf32>, vector<4x256xf32>, vector<4x256xf32>, vector<4x256xf32>, vector<4x256xf32>, vector<4x256xf32>, vector<4x256xf32>, vector<4x256xf32>, vector<4x256xf32> -> vector<36x256xf32>
    %36 = arith.truncf %35 : vector<36x256xf32> to vector<36x256xbf16>
    %c0_4 = arith.constant 0 : index
    %c0_5 = arith.constant 0 : index
    %37 = vector.load %arg3[%c0_4, %c0_5] : memref<8x36xbf16, #tpu.memory_space<vmem>>, vector<8x36xbf16>
    %cst = arith.constant dense<0.000000e+00> : vector<8x256xf32>
    %38 = tpu.matmul %37, %36, %cst {dimension_numbers = #tpu.dot_dimension_numbers<[1], [0], [0], [1], [0, 0, 1, 1], [], []>} : vector<8x36xbf16>, vector<36x256xbf16>, vector<8x256xf32> -> vector<8x256xf32>
    %c0_6 = arith.constant 0 : index
    %c0_7 = arith.constant 0 : index
    %39 = vector.load %arg4[%c0_6, %c0_7] : memref<8x1xf32, #tpu.memory_space<vmem>>, vector<8x1xf32>
    %40 = vector.broadcast %39 : vector<8x1xf32> to vector<8x256xf32>
    %41 = arith.addf %38, %40 : vector<8x256xf32>
    %cst_8 = arith.constant 0.000000e+00 : f32
    %42 = vector.broadcast %cst_8 : f32 to vector<8x256xf32>
    %43 = arith.maximumf %41, %42 : vector<8x256xf32>
    %c17_i32_9 = arith.constant 17 : i32
    %44 = tpu.dynamic_rotate %43 by %c17_i32_9 dim 1 : vector<8x256xf32>, i32 -> vector<8x256xf32>
    %45 = vector.extract_strided_slice %0 {offsets = [0, 0], sizes = [1, 256], strides = [1, 1]} : vector<9x256xf32> to vector<1x256xf32>
    %46 = vector.broadcast %45 : vector<1x256xf32> to vector<8x256xf32>
    %47 = arith.mulf %44, %46 : vector<8x256xf32>
    %c16_i32_10 = arith.constant 16 : i32
    %48 = tpu.dynamic_rotate %43 by %c16_i32_10 dim 1 : vector<8x256xf32>, i32 -> vector<8x256xf32>
    %49 = vector.extract_strided_slice %0 {offsets = [1, 0], sizes = [1, 256], strides = [1, 1]} : vector<9x256xf32> to vector<1x256xf32>
    %50 = vector.broadcast %49 : vector<1x256xf32> to vector<8x256xf32>
    %51 = arith.mulf %48, %50 : vector<8x256xf32>
    %c15_i32_11 = arith.constant 15 : i32
    %52 = tpu.dynamic_rotate %43 by %c15_i32_11 dim 1 : vector<8x256xf32>, i32 -> vector<8x256xf32>
    %53 = vector.extract_strided_slice %0 {offsets = [2, 0], sizes = [1, 256], strides = [1, 1]} : vector<9x256xf32> to vector<1x256xf32>
    %54 = vector.broadcast %53 : vector<1x256xf32> to vector<8x256xf32>
    %55 = arith.mulf %52, %54 : vector<8x256xf32>
    %c1_i32_12 = arith.constant 1 : i32
    %56 = tpu.dynamic_rotate %43 by %c1_i32_12 dim 1 : vector<8x256xf32>, i32 -> vector<8x256xf32>
    %57 = vector.extract_strided_slice %0 {offsets = [3, 0], sizes = [1, 256], strides = [1, 1]} : vector<9x256xf32> to vector<1x256xf32>
    %58 = vector.broadcast %57 : vector<1x256xf32> to vector<8x256xf32>
    %59 = arith.mulf %56, %58 : vector<8x256xf32>
    %c255_i32_13 = arith.constant 255 : i32
    %60 = tpu.dynamic_rotate %43 by %c255_i32_13 dim 1 : vector<8x256xf32>, i32 -> vector<8x256xf32>
    %61 = vector.extract_strided_slice %0 {offsets = [5, 0], sizes = [1, 256], strides = [1, 1]} : vector<9x256xf32> to vector<1x256xf32>
    %62 = vector.broadcast %61 : vector<1x256xf32> to vector<8x256xf32>
    %63 = arith.mulf %60, %62 : vector<8x256xf32>
    %c241_i32_14 = arith.constant 241 : i32
    %64 = tpu.dynamic_rotate %43 by %c241_i32_14 dim 1 : vector<8x256xf32>, i32 -> vector<8x256xf32>
    %65 = vector.extract_strided_slice %0 {offsets = [6, 0], sizes = [1, 256], strides = [1, 1]} : vector<9x256xf32> to vector<1x256xf32>
    %66 = vector.broadcast %65 : vector<1x256xf32> to vector<8x256xf32>
    %67 = arith.mulf %64, %66 : vector<8x256xf32>
    %c240_i32_15 = arith.constant 240 : i32
    %68 = tpu.dynamic_rotate %43 by %c240_i32_15 dim 1 : vector<8x256xf32>, i32 -> vector<8x256xf32>
    %69 = vector.extract_strided_slice %0 {offsets = [7, 0], sizes = [1, 256], strides = [1, 1]} : vector<9x256xf32> to vector<1x256xf32>
    %70 = vector.broadcast %69 : vector<1x256xf32> to vector<8x256xf32>
    %71 = arith.mulf %68, %70 : vector<8x256xf32>
    %c239_i32_16 = arith.constant 239 : i32
    %72 = tpu.dynamic_rotate %43 by %c239_i32_16 dim 1 : vector<8x256xf32>, i32 -> vector<8x256xf32>
    %73 = vector.extract_strided_slice %0 {offsets = [8, 0], sizes = [1, 256], strides = [1, 1]} : vector<9x256xf32> to vector<1x256xf32>
    %74 = vector.broadcast %73 : vector<1x256xf32> to vector<8x256xf32>
    %75 = arith.mulf %72, %74 : vector<8x256xf32>
    %76 = tpu.concatenate %47, %51, %55, %59, %43, %63, %67, %71, %75 in 0 : vector<8x256xf32>, vector<8x256xf32>, vector<8x256xf32>, vector<8x256xf32>, vector<8x256xf32>, vector<8x256xf32>, vector<8x256xf32>, vector<8x256xf32>, vector<8x256xf32> -> vector<72x256xf32>
    %77 = arith.truncf %76 : vector<72x256xf32> to vector<72x256xbf16>
    %c0_17 = arith.constant 0 : index
    %c0_18 = arith.constant 0 : index
    %78 = vector.load %arg5[%c0_17, %c0_18] : memref<8x72xbf16, #tpu.memory_space<vmem>>, vector<8x72xbf16>
    %cst_19 = arith.constant dense<0.000000e+00> : vector<8x256xf32>
    %79 = tpu.matmul %78, %77, %cst_19 {dimension_numbers = #tpu.dot_dimension_numbers<[1], [0], [0], [1], [0, 0, 1, 1], [], []>} : vector<8x72xbf16>, vector<72x256xbf16>, vector<8x256xf32> -> vector<8x256xf32>
    %c0_20 = arith.constant 0 : index
    %c0_21 = arith.constant 0 : index
    %80 = vector.load %arg6[%c0_20, %c0_21] : memref<8x1xf32, #tpu.memory_space<vmem>>, vector<8x1xf32>
    %81 = vector.broadcast %80 : vector<8x1xf32> to vector<8x256xf32>
    %82 = arith.addf %79, %81 : vector<8x256xf32>
    %cst_22 = arith.constant 0.000000e+00 : f32
    %83 = vector.broadcast %cst_22 : f32 to vector<8x256xf32>
    %84 = arith.maximumf %82, %83 : vector<8x256xf32>
    %c0_23 = arith.constant 0 : index
    %c0_24 = arith.constant 0 : index
    %85 = vector.load %arg7[%c0_23, %c0_24] : memref<8x4xbf16, #tpu.memory_space<vmem>>, vector<8x4xbf16>
    %86 = arith.truncf %2 : vector<4x256xf32> to vector<4x256xbf16>
    %cst_25 = arith.constant dense<0.000000e+00> : vector<8x256xf32>
    %87 = tpu.matmul %85, %86, %cst_25 {dimension_numbers = #tpu.dot_dimension_numbers<[1], [0], [0], [1], [0, 0, 1, 1], [], []>} : vector<8x4xbf16>, vector<4x256xbf16>, vector<8x256xf32> -> vector<8x256xf32>
    %c0_26 = arith.constant 0 : index
    %c0_27 = arith.constant 0 : index
    %88 = vector.load %arg8[%c0_26, %c0_27] : memref<8x1xf32, #tpu.memory_space<vmem>>, vector<8x1xf32>
    %89 = vector.broadcast %88 : vector<8x1xf32> to vector<8x256xf32>
    %90 = arith.addf %87, %89 : vector<8x256xf32>
    %91 = arith.addf %84, %90 : vector<8x256xf32>
    %cst_28 = arith.constant 0.000000e+00 : f32
    %92 = vector.broadcast %cst_28 : f32 to vector<8x256xf32>
    %93 = arith.maximumf %91, %92 : vector<8x256xf32>
    %c0_29 = arith.constant 0 : index
    %c0_30 = arith.constant 0 : index
    %c0_31 = arith.constant 0 : index
    %94 = vector.load %arg9[%c0_29, %c0_30, %c0_31] : memref<1x8x256xf32, #tpu.memory_space<vmem>>, vector<1x8x256xf32>
    %95 = vector.shape_cast %94 : vector<1x8x256xf32> to vector<8x256xf32>
    %96 = vector.shape_cast %93 : vector<8x256xf32> to vector<1x8x256xf32>
    tpu.vector_store %arg9[%c0_29, %c0_30, %c0_31], %96 {strides = array<i32>} : memref<1x8x256xf32, #tpu.memory_space<vmem>>, vector<1x8x256xf32>,
    return
  }
  func.func @transform_0(%arg0: i32) -> (i32, i32, i32) {
    %c0_i32 = arith.constant 0 : i32
    %c0_i32_0 = arith.constant 0 : i32
    %c0_i32_1 = arith.constant 0 : i32
    return %arg0, %c0_i32, %c0_i32_0 : i32, i32, i32
  }
  func.func @transform_1(%arg0: i32) -> (i32, i32) {
    %c0_i32 = arith.constant 0 : i32
    %c0_i32_0 = arith.constant 0 : i32
    %c0_i32_1 = arith.constant 0 : i32
    return %c0_i32, %c0_i32_0 : i32, i32
  }
  func.func @transform_2(%arg0: i32) -> (i32, i32) {
    %c0_i32 = arith.constant 0 : i32
    %c0_i32_0 = arith.constant 0 : i32
    %c0_i32_1 = arith.constant 0 : i32
    return %c0_i32, %c0_i32_0 : i32, i32
  }
  func.func @transform_3(%arg0: i32) -> (i32, i32) {
    %c0_i32 = arith.constant 0 : i32
    %c0_i32_0 = arith.constant 0 : i32
    %c0_i32_1 = arith.constant 0 : i32
    return %c0_i32, %c0_i32_0 : i32, i32
  }
  func.func @transform_4(%arg0: i32) -> (i32, i32) {
    %c0_i32 = arith.constant 0 : i32
    %c0_i32_0 = arith.constant 0 : i32
    %c0_i32_1 = arith.constant 0 : i32
    return %c0_i32, %c0_i32_0 : i32, i32
  }
  func.func @transform_5(%arg0: i32) -> (i32, i32) {
    %c0_i32 = arith.constant 0 : i32
    %c0_i32_0 = arith.constant 0 : i32
    %c0_i32_1 = arith.constant 0 : i32
    return %c0_i32, %c0_i32_0 : i32, i32
  }
  func.func @transform_6(%arg0: i32) -> (i32, i32) {
    %c0_i32 = arith.constant 0 : i32
    %c0_i32_0 = arith.constant 0 : i32
    %c0_i32_1 = arith.constant 0 : i32
    return %c0_i32, %c0_i32_0 : i32, i32
  }
  func.func @transform_7(%arg0: i32) -> (i32, i32) {
    %c0_i32 = arith.constant 0 : i32
    %c0_i32_0 = arith.constant 0 : i32
    %c0_i32_1 = arith.constant 0 : i32
    return %c0_i32, %c0_i32_0 : i32, i32
  }
  func.func @transform_8(%arg0: i32) -> (i32, i32, i32) {
    %c0_i32 = arith.constant 0 : i32
    %c0_i32_0 = arith.constant 0 : i32
    %c0_i32_1 = arith.constant 0 : i32
    return %arg0, %c0_i32, %c0_i32_0 : i32, i32, i32
  }
}

</mosaic_0001>

<llo_original>
// kernel: tpu_custom_call.1
$region0: #{tpu_custom_call.1}
  #allocation0 [shape = 'u32[]', space=smem, size = 0x4, offset = 0x4, fixed_abs, tag = 'smem constant byte address 0x4 - core index']
  #allocation1 [shape = 'u32[144,128]{1,0:T(1,128)}', space=vmem, size = 0x12000, scoped, tag = 'internal scratch']
  %s0 = inlined_call_operand.hbm [shape: f32[2,4,256], index: 0, kind: input, shape index: {}]
  %s1 = inlined_call_operand.vmem [shape: f32[9,256], index: 1, kind: input, shape index: {}]
  %s2 = inlined_call_operand.vmem [shape: bf16[8,36], index: 2, kind: input, shape index: {}]
  %s3 = inlined_call_operand.vmem [shape: f32[8,1], index: 3, kind: input, shape index: {}]
  %s4 = inlined_call_operand.vmem [shape: bf16[8,72], index: 4, kind: input, shape index: {}]
  %s5 = inlined_call_operand.vmem [shape: f32[8,1], index: 5, kind: input, shape index: {}]
  %s6 = inlined_call_operand.vmem [shape: bf16[8,4], index: 6, kind: input, shape index: {}]
  %s7 = inlined_call_operand.vmem [shape: f32[8,1], index: 7, kind: input, shape index: {}]
  %s8 = inlined_call_operand.hbm [shape: f32[2,8,256], index: 8, kind: output, shape index: {}]
  %s9 = sld [smem:[#allocation0]]
  $region69: #{tpu_custom_call.1} parent=0
    _
  %s11 = ssub.s32 1, %s9
  %s12 = scalar_select 0, %s11, %s9
  $region1: #{tpu_custom_call.1} parent=0
    #allocation2 [shape = 'u8[8192]{0}', space=vmem, size = 0x2000, scoped, tag = 'input window, operand 0']
    #allocation3 [shape = 's32[2]{0}', space=sflag, size = 0x8, scoped, tag = 'scoped memory for tpu_custom_call.1']
    #allocation4 [shape = 's32[2]{0}', space=sflag, size = 0x8, scoped, tag = 'scoped memory for tpu_custom_call.1']
    #allocation5 [shape = 'u8[16384]{0}', space=vmem, size = 0x4000, scoped, tag = 'output window, operand 0']
    %13 = vsyncpa [#allocation3], 0
    %s14 = scalar_lea.sflag [#allocation3], 1
    %15 = vsyncpa %s14, 0
    %16 = vsyncpa [#allocation4], 0
    %s17 = scalar_lea.sflag [#allocation4], 1
    %18 = vsyncpa %s17, 0
    loop: start=0, step=1, limit=4
    $region2: #{tpu_custom_call.1} parent=1 // loop_pre_header
      _
    $region3: #{tpu_custom_call.1} parent=1 // loop_header
      %s20 = sphi 0, %s24
      %p21 = scmp.ge.s32.totalorder %s20, 4
      %s30 = sphi 0, %s32
      %s33 = sphi 0, %s30
      %s34 = sphi 0, %s33
      %s50 = sphi 0, %s34
      %s54 = sphi 0, %s54
      %s56 = sphi 0, %s54
      %s57 = sphi 0, %s56
      %s71 = sphi 0, %s57
      %s75 = sphi 0, %s75
      %s77 = sphi 0, %s75
      %s78 = sphi 0, %s77
      %s92 = sphi 0, %s78
      %s96 = sphi 0, %s96
      %s98 = sphi 0, %s96
      %s99 = sphi 0, %s98
      %s113 = sphi 0, %s99
      %s117 = sphi 0, %s117
      %s119 = sphi 0, %s117
      %s120 = sphi 0, %s119
      %s134 = sphi 0, %s120
      %s138 = sphi 0, %s138
      %s140 = sphi 0, %s138
      %s141 = sphi 0, %s140
      %s155 = sphi 0, %s141
      %s159 = sphi 0, %s159
      %s161 = sphi 0, %s159
      %s162 = sphi 0, %s161
      %s176 = sphi 0, %s162
      %s180 = sphi 0, %s180
      %s182 = sphi 0, %s180
      %s183 = sphi 0, %s182
      %s197 = sphi 0, %s183
      %s203 = sphi 0, %s205
      %s206 = sphi 0, %s203
      %s207 = sphi 0, %s206
      %s223 = sphi 0, %s207
    $region4: #{tpu_custom_call.1} parent=1 // loop_header_branch
      %23 = sbr.rel (%p21) target = $region8
    $region5: #{tpu_custom_call.1} parent=1 // loop_body
      %s25 = ssub.s32 %s20, 1
      %s26 = ssub.s32 %s20, 2
      %s27 = sadd.s32 %s20, 1
      %s28 = ssub.s32 %s20, %s27
      %p29 = scmp.eq.s32.totalorder %s28, 0
      %s31 = sadd.s32 %s30, 1
      %s32 = scalar_select %p29, %s30, %s31
      %p35 = pneg %p29
      %p36 = scmp.eq.s32.totalorder %s20, 1
      %p37 = por %p35, %p36
      %p38 = scmp.ne.s32.totalorder %s30, %s33
      %p39 = scmp.eq.s32.totalorder %s20, 0
      %p40 = por %p38, %p39
      %p41 = scmp.ne.s32.totalorder %s30, %s33
      %p42 = scmp.eq.s32.totalorder %s25, 1
      %p43 = por %p41, %p42
      %p44 = scmp.ne.s32.totalorder %s33, %s34
      %p45 = scmp.eq.s32.totalorder %s25, 0
      %p46 = por %p44, %p45
      %p47 = scmp.ne.s32.totalorder %s33, %s34
      %p48 = scmp.eq.s32.totalorder %s26, 1
      %p49 = por %p47, %p48
      %p51 = scmp.ne.s32.totalorder %s34, %s50
      %p52 = scmp.eq.s32.totalorder %s26, 0
      %p53 = por %p51, %p52
      %s55 = sadd.s32 %s54, 1
      %p58 = scmp.eq.s32.totalorder %s20, 1
      %p59 = scmp.ne.s32.totalorder %s54, %s56
      %p60 = scmp.eq.s32.totalorder %s20, 0
      %p61 = por %p59, %p60
      %p62 = scmp.ne.s32.totalorder %s54, %s56
      %p63 = scmp.eq.s32.totalorder %s25, 1
      %p64 = por %p62, %p63
      %p65 = scmp.ne.s32.totalorder %s56, %s57
      %p66 = scmp.eq.s32.totalorder %s25, 0
      %p67 = por %p65, %p66
      %p68 = scmp.ne.s32.totalorder %s56, %s57
      %p69 = scmp.eq.s32.totalorder %s26, 1
      %p70 = por %p68, %p69
      %p72 = scmp.ne.s32.totalorder %s57, %s71
      %p73 = scmp.eq.s32.totalorder %s26, 0
      %p74 = por %p72, %p73
      %s76 = sadd.s32 %s75, 1
      %p79 = scmp.eq.s32.totalorder %s20, 1
      %p80 = scmp.ne.s32.totalorder %s75, %s77
      %p81 = scmp.eq.s32.totalorder %s20, 0
      %p82 = por %p80, %p81
      %p83 = scmp.ne.s32.totalorder %s75, %s77
      %p84 = scmp.eq.s32.totalorder %s25, 1
      %p85 = por %p83, %p84
      %p86 = scmp.ne.s32.totalorder %s77, %s78
      %p87 = scmp.eq.s32.totalorder %s25, 0
      %p88 = por %p86, %p87
      %p89 = scmp.ne.s32.totalorder %s77, %s78
      %p90 = scmp.eq.s32.totalorder %s26, 1
      %p91 = por %p89, %p90
      %p93 = scmp.ne.s32.totalorder %s78, %s92
      %p94 = scmp.eq.s32.totalorder %s26, 0
      %p95 = por %p93, %p94
      %s97 = sadd.s32 %s96, 1
      %p100 = scmp.eq.s32.totalorder %s20, 1
      %p101 = scmp.ne.s32.totalorder %s96, %s98
      %p102 = scmp.eq.s32.totalorder %s20, 0
      %p103 = por %p101, %p102
      %p104 = scmp.ne.s32.totalorder %s96, %s98
      %p105 = scmp.eq.s32.totalorder %s25, 1
      %p106 = por %p104, %p105
      %p107 = scmp.ne.s32.totalorder %s98, %s99
      %p108 = scmp.eq.s32.totalorder %s25, 0
      %p109 = por %p107, %p108
      %p110 = scmp.ne.s32.totalorder %s98, %s99
      %p111 = scmp.eq.s32.totalorder %s26, 1
      %p112 = por %p110, %p111
      %p114 = scmp.ne.s32.totalorder %s99, %s113
      %p115 = scmp.eq.s32.totalorder %s26, 0
      %p116 = por %p114, %p115
      %s118 = sadd.s32 %s117, 1
      %p121 = scmp.eq.s32.totalorder %s20, 1
      %p122 = scmp.ne.s32.totalorder %s117, %s119
      %p123 = scmp.eq.s32.totalorder %s20, 0
      %p124 = por %p122, %p123
      %p125 = scmp.ne.s32.totalorder %s117, %s119
      %p126 = scmp.eq.s32.totalorder %s25, 1
      %p127 = por %p125, %p126
      %p128 = scmp.ne.s32.totalorder %s119, %s120
      %p129 = scmp.eq.s32.totalorder %s25, 0
      %p130 = por %p128, %p129
      %p131 = scmp.ne.s32.totalorder %s119, %s120
      %p132 = scmp.eq.s32.totalorder %s26, 1
      %p133 = por %p131, %p132
      %p135 = scmp.ne.s32.totalorder %s120, %s134
      %p136 = scmp.eq.s32.totalorder %s26, 0
      %p137 = por %p135, %p136
      %s139 = sadd.s32 %s138, 1
      %p142 = scmp.eq.s32.totalorder %s20, 1
      %p143 = scmp.ne.s32.totalorder %s138, %s140
      %p144 = scmp.eq.s32.totalorder %s20, 0
      %p145 = por %p143, %p144
      %p146 = scmp.ne.s32.totalorder %s138, %s140
      %p147 = scmp.eq.s32.totalorder %s25, 1
      %p148 = por %p146, %p147
      %p149 = scmp.ne.s32.totalorder %s140, %s141
      %p150 = scmp.eq.s32.totalorder %s25, 0
      %p151 = por %p149, %p150
      %p152 = scmp.ne.s32.totalorder %s140, %s141
      %p153 = scmp.eq.s32.totalorder %s26, 1
      %p154 = por %p152, %p153
      %p156 = scmp.ne.s32.totalorder %s141, %s155
      %p157 = scmp.eq.s32.totalorder %s26, 0
      %p158 = por %p156, %p157
      %s160 = sadd.s32 %s159, 1
      %p163 = scmp.eq.s32.totalorder %s20, 1
      %p164 = scmp.ne.s32.totalorder %s159, %s161
      %p165 = scmp.eq.s32.totalorder %s20, 0
      %p166 = por %p164, %p165
      %p167 = scmp.ne.s32.totalorder %s159, %s161
      %p168 = scmp.eq.s32.totalorder %s25, 1
      %p169 = por %p167, %p168
      %p170 = scmp.ne.s32.totalorder %s161, %s162
      %p171 = scmp.eq.s32.totalorder %s25, 0
      %p172 = por %p170, %p171
      %p173 = scmp.ne.s32.totalorder %s161, %s162
      %p174 = scmp.eq.s32.totalorder %s26, 1
      %p175 = por %p173, %p174
      %p177 = scmp.ne.s32.totalorder %s162, %s176
      %p178 = scmp.eq.s32.totalorder %s26, 0
      %p179 = por %p177, %p178
      %s181 = sadd.s32 %s180, 1
      %p184 = scmp.eq.s32.totalorder %s20, 1
      %p185 = scmp.ne.s32.totalorder %s180, %s182
      %p186 = scmp.eq.s32.totalorder %s20, 0
      %p187 = por %p185, %p186
      %p188 = scmp.ne.s32.totalorder %s180, %s182
      %p189 = scmp.eq.s32.totalorder %s25, 1
      %p190 = por %p188, %p189
      %p191 = scmp.ne.s32.totalorder %s182, %s183
      %p192 = scmp.eq.s32.totalorder %s25, 0
      %p193 = por %p191, %p192
      %p194 = scmp.ne.s32.totalorder %s182, %s183
      %p195 = scmp.eq.s32.totalorder %s26, 1
      %p196 = por %p194, %p195
      %p198 = scmp.ne.s32.totalorder %s183, %s197
      %p199 = scmp.eq.s32.totalorder %s26, 0
      %p200 = por %p198, %p199
      %s201 = ssub.s32 %s20, %s27
      %p202 = scmp.eq.s32.totalorder %s201, 0
      %s204 = sadd.s32 %s203, 1
      %s205 = scalar_select %p202, %s203, %s204
      %p208 = pneg %p202
      %p209 = scmp.eq.s32.totalorder %s20, 1
      %p210 = por %p208, %p209
      %p211 = scmp.ne.s32.totalorder %s203, %s206
      %p212 = scmp.eq.s32.totalorder %s20, 0
      %p213 = por %p211, %p212
      %p214 = scmp.ne.s32.totalorder %s203, %s206
      %p215 = scmp.eq.s32.totalorder %s25, 1
      %p216 = por %p214, %p215
      %p217 = scmp.ne.s32.totalorder %s206, %s207
      %p218 = scmp.eq.s32.totalorder %s25, 0
      %p219 = por %p217, %p218
      %p220 = scmp.ne.s32.totalorder %s206, %s207
      %p221 = scmp.eq.s32.totalorder %s26, 1
      %p222 = por %p220, %p221
      %p224 = scmp.ne.s32.totalorder %s207, %s223
      %p225 = scmp.eq.s32.totalorder %s26, 0
      %p226 = por %p224, %p225
      %p227 = scmp.le.s32.totalorder 1, %s20
      %p228 = scmp.lt.s32.totalorder %s20, 3
      %p229 = pnand %p227, %p228
      %p230 = pneg %p229
      // Predicated region
      $region9: #{tpu_custom_call.1} parent=5 // pred_check
        _
      $region10: #{tpu_custom_call.1} parent=5 // pred_check_branch
        %232 = sbr.rel (%p229) target = $region12
      $region11: #{tpu_custom_call.1} parent=5 // pred_region
        %s233 = ssub.s32 %s20, 1
        // Predicated region
        $region13: #{tpu_custom_call.1} parent=11 // pred_check
          %p234 = pneg %p67
        $region14: #{tpu_custom_call.1} parent=11 // pred_check_branch
          %236 = sbr.rel (%p234) target = $region16
        $region15: #{tpu_custom_call.1} parent=11 // pred_region
          _
        $region16: #{tpu_custom_call.1} parent=11 // pred_fallthru
          _
        // Predicated region
        $region17: #{tpu_custom_call.1} parent=11 // pred_check
          %p237 = pneg %p88
        $region18: #{tpu_custom_call.1} parent=11 // pred_check_branch
          %239 = sbr.rel (%p237) target = $region20
        $region19: #{tpu_custom_call.1} parent=11 // pred_region
          _
        $region20: #{tpu_custom_call.1} parent=11 // pred_fallthru
          _
        // Predicated region
        $region21: #{tpu_custom_call.1} parent=11 // pred_check
          %p240 = pneg %p109
        $region22: #{tpu_custom_call.1} parent=11 // pred_check_branch
          %242 = sbr.rel (%p240) target = $region24
        $region23: #{tpu_custom_call.1} parent=11 // pred_region
          _
        $region24: #{tpu_custom_call.1} parent=11 // pred_fallthru
          _
        // Predicated region
        $region25: #{tpu_custom_call.1} parent=11 // pred_check
          %p243 = pneg %p130
        $region26: #{tpu_custom_call.1} parent=11 // pred_check_branch
          %245 = sbr.rel (%p243) target = $region28
        $region27: #{tpu_custom_call.1} parent=11 // pred_region
          _
        $region28: #{tpu_custom_call.1} parent=11 // pred_fallthru
          _
        // Predicated region
        $region29: #{tpu_custom_call.1} parent=11 // pred_check
          %p246 = pneg %p151
        $region30: #{tpu_custom_call.1} parent=11 // pred_check_branch
          %248 = sbr.rel (%p246) target = $region32
        $region31: #{tpu_custom_call.1} parent=11 // pred_region
          _
        $region32: #{tpu_custom_call.1} parent=11 // pred_fallthru
          _
        // Predicated region
        $region33: #{tpu_custom_call.1} parent=11 // pred_check
          %p249 = pneg %p172
        $region34: #{tpu_custom_call.1} parent=11 // pred_check_branch
          %251 = sbr.rel (%p249) target = $region36
        $region35: #{tpu_custom_call.1} parent=11 // pred_region
          _
        $region36: #{tpu_custom_call.1} parent=11 // pred_fallthru
          _
        // Predicated region
        $region37: #{tpu_custom_call.1} parent=11 // pred_check
          %p252 = pneg %p193
        $region38: #{tpu_custom_call.1} parent=11 // pred_check_branch
          %254 = sbr.rel (%p252) target = $region40
        $region39: #{tpu_custom_call.1} parent=11 // pred_region
          _
        $region40: #{tpu_custom_call.1} parent=11 // pred_fallthru
          _
      $region12: #{tpu_custom_call.1} parent=5 // pred_fallthru
        _
      %p255 = scmp.lt.s32.totalorder %s20, 2
      // Predicated region
      $region41: #{tpu_custom_call.1} parent=5 // pred_check
        %p256 = pneg %p255
      $region42: #{tpu_custom_call.1} parent=5 // pred_check_branch
        %258 = sbr.rel (%p256) target = $region44
      $region43: #{tpu_custom_call.1} parent=5 // pred_region
        // Predicated region
        $region45: #{tpu_custom_call.1} parent=43 // pred_check
          %p259 = pneg %p40
        $region46: #{tpu_custom_call.1} parent=43 // pred_check_branch
          %261 = sbr.rel (%p259) target = $region48
        $region47: #{tpu_custom_call.1} parent=43 // pred_region
          %s262 = sand.u32 %s30, 1
          %s263 = scalar_lea.sflag [#allocation3], %s262
          %s264 = sand.u32 %s30, 1
          %s265 = smul.addr %s264, 8
          %s266 = scalar_lea.vmem [#allocation2], %s265
          %s268 = ssub.s32 128, 128
          %269 = vsyncadd %s263, %s268
          %s270 = smul.addr %s20, 2
          %s271 = smul.addr %s270, 64
          %s272 = scalar_lea.hbm %s0, %s271
          %s274 = sshll.u32 %s266, 4
          %s275 = int_to_ptr.vmem [resolvable:$true] %s274
          %277 = dma.hbm_to_vmem [thread:$0]  %s272, 128, %s275, %s263
        $region48: #{tpu_custom_call.1} parent=43 // pred_fallthru
          _
      $region44: #{tpu_custom_call.1} parent=5 // pred_fallthru
        _
      %p278 = scmp.le.s32.totalorder 1, %s20
      %p279 = scmp.lt.s32.totalorder %s20, 3
      %p280 = pnand %p278, %p279
      %p281 = pneg %p280
      // Predicated region
      $region49: #{tpu_custom_call.1} parent=5 // pred_check
        _
      $region50: #{tpu_custom_call.1} parent=5 // pred_check_branch
        %283 = sbr.rel (%p280) target = $region52
      $region51: #{tpu_custom_call.1} parent=5 // pred_region
        %s284 = ssub.s32 %s20, 1
        %s285 = sand.u32 %s33, 1
        %s286 = scalar_lea.sflag [#allocation3], %s285
        %s287 = sand.u32 %s33, 1
        %s288 = smul.addr %s287, 8
        %s289 = scalar_lea.vmem [#allocation2], %s288
        // Predicated region
        $region53: #{tpu_custom_call.1} parent=51 // pred_check
          %p290 = pneg %p46
        $region54: #{tpu_custom_call.1} parent=51 // pred_check_branch
          %292 = sbr.rel (%p290) target = $region56
        $region55: #{tpu_custom_call.1} parent=51 // pred_region
          %293 = dma.done %s286, 128
        $region56: #{tpu_custom_call.1} parent=51 // pred_fallthru
          _
        %s294 = sand.u32 %s33, 1
        %s295 = scalar_lea.sflag [#allocation3], %s294
        %s296 = sand.u32 %s33, 1
        %s297 = smul.addr %s296, 8
        %s298 = scalar_lea.vmem [#allocation2], %s297
        %p299 = pneg %p46
        %p300 = pneg %p43
        %p301 = pneg %p67
        %p302 = pneg %p64
        %p303 = pneg %p88
        %p304 = pneg %p85
        %p305 = pneg %p109
        %p306 = pneg %p106
        %p307 = pneg %p130
        %p308 = pneg %p127
        %p309 = pneg %p151
        %p310 = pneg %p148
        %p311 = pneg %p172
        %p312 = pneg %p169
        %p313 = pneg %p193
        %p314 = pneg %p190
        %p315 = pneg %p219
        %p316 = pneg %p216
        %s317 = sand.u32 %s206, 1
        %s318 = scalar_lea.sflag [#allocation4], %s317
        %s319 = sand.u32 %s206, 1
        %s320 = smul.addr %s319, 16
        %s321 = scalar_lea.vmem [#allocation5], %s320
        %v323 = vld [vmem:[%s1] sm:$0xff]
        %v324 = vld [vmem:[%s1 + $0x8] sm:$0xff]
        %v325 = vld [vmem:[%s1 + $0x10] sm:$0x1]
        %v326 = vld [vmem:[%s1 + $0x18] sm:$0x1]
        %v327 = vld [vmem:[%s289] sm:$0xff]
        %v329 = vcombine.high %v327, %v327
        %331 = vrot.lane.b32.xlu0 %v327, 17
        %v332 = vpop.permute.xlu0 %331
        %333 = vrot.lane.b32.xlu0 %v329, 17
        %v334 = vpop.permute.xlu0 %333
        %v335 = vlaneseq
        %v336 = vand.u32 %v335, 127
        %vm337 = vcmp.lt.s32.totalorder %v336, 17
        %v338 = vsel %vm337, %v332, %v334
        %v339 = vsel %vm337, %v334, %v332
        %v340 = vlaneseq
        %v341 = vshrl.u32 %v340, 7
        %v342 = vsub.s32 0, %v341
        %v343 = vrot.slane %v323, %v342
        %v344 = vlaneseq
        %v345 = vshrl.u32 %v344, 7
        %v346 = vsub.s32 0, %v345
        %v347 = vrot.slane %v324, %v346
        %v348 = vmul.f32 %v339, %v343
        %v349 = vmul.f32 %v338, %v347
        %350 = vrot.lane.b32.xlu0 %v327, 16
        %v351 = vpop.permute.xlu0 %350
        %352 = vrot.lane.b32.xlu0 %v329, 16
        %v353 = vpop.permute.xlu0 %352
        %vm354 = vcmp.lt.s32.totalorder %v336, 16
        %v355 = vsel %vm354, %v351, %v353
        %v356 = vsel %vm354, %v353, %v351
        %v357 = vlaneseq
        %v358 = vshrl.u32 %v357, 7
        %v359 = vsub.s32 1, %v358
        %v360 = vrot.slane %v323, %v359
        %v361 = vlaneseq
        %v362 = vshrl.u32 %v361, 7
        %v363 = vsub.s32 1, %v362
        %v364 = vrot.slane %v324, %v363
        %v365 = vmul.f32 %v356, %v360
        %v366 = vmul.f32 %v355, %v364
        %367 = vrot.lane.b32.xlu0 %v327, 15
        %v368 = vpop.permute.xlu0 %367
        %369 = vrot.lane.b32.xlu0 %v329, 15
        %v370 = vpop.permute.xlu0 %369
        %vm371 = vcmp.lt.s32.totalorder %v336, 15
        %v372 = vsel %vm371, %v368, %v370
        %v373 = vsel %vm371, %v370, %v368
        %v374 = vlaneseq
        %v375 = vshrl.u32 %v374, 7
        %v376 = vsub.s32 2, %v375
        %v377 = vrot.slane %v323, %v376
        %v378 = vlaneseq
        %v379 = vshrl.u32 %v378, 7
        %v380 = vsub.s32 2, %v379
        %v381 = vrot.slane %v324, %v380
        %v382 = vmul.f32 %v373, %v377
        %v383 = vmul.f32 %v372, %v381
        %384 = vrot.lane.b32.xlu0 %v327, 1
        %v385 = vpop.permute.xlu0 %384
        %386 = vrot.lane.b32.xlu0 %v329, 1
        %v387 = vpop.permute.xlu0 %386
        %vm388 = vcmp.lt.s32.totalorder %v336, 1
        %v389 = vsel %vm388, %v385, %v387
        %v390 = vsel %vm388, %v387, %v385
        %v391 = vlaneseq
        %v392 = vshrl.u32 %v391, 7
        %v393 = vsub.s32 3, %v392
        %v394 = vrot.slane %v323, %v393
        %v395 = vlaneseq
        %v396 = vshrl.u32 %v395, 7
        %v397 = vsub.s32 3, %v396
        %v398 = vrot.slane %v324, %v397
        %v399 = vmul.f32 %v390, %v394
        %v400 = vmul.f32 %v389, %v398
        %401 = vrot.lane.b32.xlu0 %v327, 127
        %v402 = vpop.permute.xlu0 %401
        %403 = vrot.lane.b32.xlu0 %v329, 127
        %v404 = vpop.permute.xlu0 %403
        %vm405 = vcmp.lt.s32.totalorder %v336, 127
        %v406 = vsel %vm405, %v402, %v404
        %v407 = vsel %vm405, %v404, %v402
        %v408 = vlaneseq
        %v409 = vshrl.u32 %v408, 7
        %v410 = vsub.s32 5, %v409
        %v411 = vrot.slane %v323, %v410
        %v412 = vlaneseq
        %v413 = vshrl.u32 %v412, 7
        %v414 = vsub.s32 5, %v413
        %v415 = vrot.slane %v324, %v414
        %v416 = vmul.f32 %v406, %v411
        %v417 = vmul.f32 %v407, %v415
        %418 = vrot.lane.b32.xlu0 %v327, 113
        %v419 = vpop.permute.xlu0 %418
        %420 = vrot.lane.b32.xlu0 %v329, 113
        %v421 = vpop.permute.xlu0 %420
        %vm422 = vcmp.lt.s32.totalorder %v336, 113
        %v423 = vsel %vm422, %v419, %v421
        %v424 = vsel %vm422, %v421, %v419
        %v425 = vlaneseq
        %v426 = vshrl.u32 %v425, 7
        %v427 = vsub.s32 6, %v426
        %v428 = vrot.slane %v323, %v427
        %v429 = vlaneseq
        %v430 = vshrl.u32 %v429, 7
        %v431 = vsub.s32 6, %v430
        %v432 = vrot.slane %v324, %v431
        %v433 = vmul.f32 %v423, %v428
        %v434 = vmul.f32 %v424, %v432
        %435 = vrot.lane.b32.xlu0 %v327, 112
        %v436 = vpop.permute.xlu0 %435
        %437 = vrot.lane.b32.xlu0 %v329, 112
        %v438 = vpop.permute.xlu0 %437
        %vm439 = vcmp.lt.s32.totalorder %v336, 112
        %v440 = vsel %vm439, %v436, %v438
        %v441 = vsel %vm439, %v438, %v436
        %v442 = vlaneseq
        %v443 = vshrl.u32 %v442, 7
        %v444 = vsub.s32 7, %v443
        %v445 = vrot.slane %v323, %v444
        %v446 = vlaneseq
        %v447 = vshrl.u32 %v446, 7
        %v448 = vsub.s32 7, %v447
        %v449 = vrot.slane %v324, %v448
        %v450 = vmul.f32 %v440, %v445
        %v451 = vmul.f32 %v441, %v449
        %452 = vrot.lane.b32.xlu0 %v327, 111
        %v453 = vpop.permute.xlu0 %452
        %454 = vrot.lane.b32.xlu0 %v329, 111
        %v455 = vpop.permute.xlu0 %454
        %vm456 = vcmp.lt.s32.totalorder %v336, 111
        %v457 = vsel %vm456, %v453, %v455
        %v458 = vsel %vm456, %v455, %v453
        %v459 = vlaneseq
        %v460 = vshrl.u32 %v459, 7
        %v461 = vsub.s32 0, %v460
        %v462 = vrot.slane %v325, %v461
        %v463 = vlaneseq
        %v464 = vshrl.u32 %v463, 7
        %v465 = vsub.s32 0, %v464
        %v466 = vrot.slane %v326, %v465
        %v467 = vmul.f32 %v457, %v462
        %v468 = vmul.f32 %v458, %v466
        %v471 = vrot.slane %v365, 4
        %v472 = vrot.slane %v366, 4
        %v477 = vrot.slane %v399, 4
        %v478 = vrot.slane %v400, 4
        %v483 = vrot.slane %v416, 4
        %v484 = vrot.slane %v417, 4
        %v489 = vrot.slane %v450, 4
        %v490 = vrot.slane %v451, 4
        %vm493 = vcmask 1043456
        %v494 = vsel %vm493, %v348, %v471
        %v495 = vsel %vm493, %v349, %v472
        %v496 = vsel %vm493, %v382, %v477
        %v497 = vsel %vm493, %v383, %v478
        %v498 = vsel %vm493, %v327, %v483
        %v499 = vsel %vm493, %v329, %v484
        %v500 = vsel %vm493, %v433, %v489
        %v501 = vsel %vm493, %v434, %v490
        %v502 = vpack.c.bf16 %v496, %v494
        %v503 = vpack.c.bf16 %v497, %v495
        %v504 = vpack.c.bf16 %v500, %v498
        %v505 = vpack.c.bf16 %v501, %v499
        %v506 = vpack.c.bf16 %v467, %v467
        %v507 = vpack.c.bf16 %v468, %v468
        %v508 = vld [vmem:[%s2] sm:$0xf]
        %v509 = vld [vmem:[%s3] sm:$0xff]
        %511 = vset.pattern.permute.xlu0 0
        %512 = vperm.xlu0 %511, %v509
        %v513 = vpop.permute.xlu0 %512
        %vm515 = vcmask 293888
        %v517 = vsel %vm515, %v508, 0
        %vm519 = vcmask 1041408
        %v521 = vsel %vm519, %v506, 0
        %v524 = vsel %vm519, %v507, 0
        %526 = vmatprep.subr.bf16.mxu0 %v503
        %527 = vmatpush1.bf16.msra.mxu0 %v502
        %528 = vmatprep.subr.bf16.mxu0 %v505
        %529 = vmatpush1.bf16.msra.mxu0 %v504
        %530 = vmatprep.subr.bf16.mxu0 %v524
        %531 = vmatpush1.bf16.msra.mxu0 %v521
        %532 = vmatprep.subr.bf16.mxu0 0
        %533 = vmatpush1.bf16.msra.mxu0 0
        %534 = vmatprep.subr.bf16.mxu0 0
        %535 = vmatpush1.bf16.msra.mxu0 0
        %536 = vmatprep.subr.bf16.mxu0 0
        %537 = vmatpush1.bf16.msra.mxu0 0
        %538 = vmatprep.subr.bf16.mxu0 0
        %539 = vmatpush1.bf16.msra.mxu0 0
        %540 = vmatprep.subr.bf16.mxu0 0
        %541 = vmatpush1.bf16.msra.mxu0 0
        %542 = vmatprep.subr.bf16.mxu0 0
        %543 = vmatpush1.bf16.msra.mxu0 0
        %544 = vmatprep.subr.bf16.mxu0 0
        %545 = vmatpush1.bf16.msra.mxu0 0
        %546 = vmatprep.subr.bf16.mxu0 0
        %547 = vmatpush1.bf16.msra.mxu0 0
        %548 = vmatprep.subr.bf16.mxu0 0
        %549 = vmatpush1.bf16.msra.mxu0 0
        %550 = vmatprep.subr.bf16.mxu0 0
        %551 = vmatpush1.bf16.msra.mxu0 0
        %552 = vmatprep.subr.bf16.mxu0 0
        %553 = vmatpush1.bf16.msra.mxu0 0
        %554 = vmatprep.subr.bf16.mxu0 0
        %555 = vmatpush1.bf16.msra.mxu0 0
        %556 = vmatprep.subr.bf16.mxu0 0
        %557 = vmatpush1.bf16.msra.mxu0 0
        %558 = vmatprep.mubr.bf16.mxu0 0
        %559 = vmatmul.mubr.bf16.gmra.mrb[0].mxu0 %v517
        %v560 = vpop.f32.mrb[0].mxu0
        %v561 = vadd.f32 %v513, %v560
        %v562 = vpop.f32.mrb[0].mxu0
        %v563 = vadd.f32 %v513, %v562
        %v564 = vpop.f32.mrb[0].mxu0
        %v565 = vpop.f32.mrb[0].mxu0
        %566 = vdwg.mxu0
        %v567 = vmax.f32 %v561, 0.0
        %v568 = vmax.f32 %v563, 0.0
        %569 = vrot.lane.b32.xlu0 %v567, 17
        %v570 = vpop.permute.xlu0 %569
        %571 = vrot.lane.b32.xlu0 %v568, 17
        %v572 = vpop.permute.xlu0 %571
        %v573 = vsel %vm337, %v570, %v572
        %v574 = vsel %vm337, %v572, %v570
        %v575 = vmul.f32 %v574, %v343
        %v576 = vmul.f32 %v573, %v347
        %577 = vrot.lane.b32.xlu0 %v567, 16
        %v578 = vpop.permute.xlu0 %577
        %579 = vrot.lane.b32.xlu0 %v568, 16
        %v580 = vpop.permute.xlu0 %579
        %v581 = vsel %vm354, %v578, %v580
        %v582 = vsel %vm354, %v580, %v578
        %v583 = vmul.f32 %v582, %v360
        %v584 = vmul.f32 %v581, %v364
        %585 = vrot.lane.b32.xlu0 %v567, 15
        %v586 = vpop.permute.xlu0 %585
        %587 = vrot.lane.b32.xlu0 %v568, 15
        %v588 = vpop.permute.xlu0 %587
        %v589 = vsel %vm371, %v586, %v588
        %v590 = vsel %vm371, %v588, %v586
        %v591 = vmul.f32 %v590, %v377
        %v592 = vmul.f32 %v589, %v381
        %593 = vrot.lane.b32.xlu0 %v567, 1
        %v594 = vpop.permute.xlu0 %593
        %595 = vrot.lane.b32.xlu0 %v568, 1
        %v596 = vpop.permute.xlu0 %595
        %v597 = vsel %vm388, %v594, %v596
        %v598 = vsel %vm388, %v596, %v594
        %v599 = vmul.f32 %v598, %v394
        %v600 = vmul.f32 %v597, %v398
        %601 = vrot.lane.b32.xlu0 %v567, 127
        %v602 = vpop.permute.xlu0 %601
        %603 = vrot.lane.b32.xlu0 %v568, 127
        %v604 = vpop.permute.xlu0 %603
        %v605 = vsel %vm405, %v602, %v604
        %v606 = vsel %vm405, %v604, %v602
        %v607 = vmul.f32 %v605, %v411
        %v608 = vmul.f32 %v606, %v415
        %609 = vrot.lane.b32.xlu0 %v567, 113
        %v610 = vpop.permute.xlu0 %609
        %611 = vrot.lane.b32.xlu0 %v568, 113
        %v612 = vpop.permute.xlu0 %611
        %v613 = vsel %vm422, %v610, %v612
        %v614 = vsel %vm422, %v612, %v610
        %v615 = vmul.f32 %v613, %v428
        %v616 = vmul.f32 %v614, %v432
        %617 = vrot.lane.b32.xlu0 %v567, 112
        %v618 = vpop.permute.xlu0 %617
        %619 = vrot.lane.b32.xlu0 %v568, 112
        %v620 = vpop.permute.xlu0 %619
        %v621 = vsel %vm439, %v618, %v620
        %v622 = vsel %vm439, %v620, %v618
        %v623 = vmul.f32 %v621, %v445
        %v624 = vmul.f32 %v622, %v449
        %625 = vrot.lane.b32.xlu0 %v567, 111
        %v626 = vpop.permute.xlu0 %625
        %627 = vrot.lane.b32.xlu0 %v568, 111
        %v628 = vpop.permute.xlu0 %627
        %v629 = vsel %vm456, %v626, %v628
        %v630 = vsel %vm456, %v628, %v626
        %v631 = vmul.f32 %v629, %v462
        %v632 = vmul.f32 %v630, %v466
        %v633 = vpack.c.bf16 %v583, %v575
        %v634 = vpack.c.bf16 %v584, %v576
        %v635 = vpack.c.bf16 %v599, %v591
        %v636 = vpack.c.bf16 %v600, %v592
        %v637 = vpack.c.bf16 %v607, %v567
        %v638 = vpack.c.bf16 %v608, %v568
        %v639 = vpack.c.bf16 %v623, %v615
        %v640 = vpack.c.bf16 %v624, %v616
        %v641 = vpack.c.bf16 %v631, %v631
        %v642 = vpack.c.bf16 %v632, %v632
        %v643 = vld [vmem:[%s4] sm:$0xf]
        %v644 = vld [vmem:[%s5] sm:$0xff]
        %646 = vset.pattern.permute.xlu0 0
        %647 = vperm.xlu0 %646, %v644
        %v648 = vpop.permute.xlu0 %647
        %vm650 = vcmask 588800
        %v652 = vsel %vm650, %v643, 0
        %v655 = vsel %vm493, %v641, 0
        %v658 = vsel %vm493, %v642, 0
        %660 = vmatprep.subr.bf16.mxu0 %v634
        %661 = vmatpush1.bf16.msra.mxu0 %v633
        %662 = vmatprep.subr.bf16.mxu0 %v636
        %663 = vmatpush1.bf16.msra.mxu0 %v635
        %664 = vmatprep.subr.bf16.mxu0 %v638
        %665 = vmatpush1.bf16.msra.mxu0 %v637
        %666 = vmatprep.subr.bf16.mxu0 %v640
        %667 = vmatpush1.bf16.msra.mxu0 %v639
        %668 = vmatprep.subr.bf16.mxu0 %v658
        %669 = vmatpush1.bf16.msra.mxu0 %v655
        %670 = vmatprep.subr.bf16.mxu0 0
        %671 = vmatpush1.bf16.msra.mxu0 0
        %672 = vmatprep.subr.bf16.mxu0 0
        %673 = vmatpush1.bf16.msra.mxu0 0
        %674 = vmatprep.subr.bf16.mxu0 0
        %675 = vmatpush1.bf16.msra.mxu0 0
        %676 = vmatprep.subr.bf16.mxu0 0
        %677 = vmatpush1.bf16.msra.mxu0 0
        %678 = vmatprep.subr.bf16.mxu0 0
        %679 = vmatpush1.bf16.msra.mxu0 0
        %680 = vmatprep.subr.bf16.mxu0 0
        %681 = vmatpush1.bf16.msra.mxu0 0
        %682 = vmatprep.subr.bf16.mxu0 0
        %683 = vmatpush1.bf16.msra.mxu0 0
        %684 = vmatprep.subr.bf16.mxu0 0
        %685 = vmatpush1.bf16.msra.mxu0 0
        %686 = vmatprep.subr.bf16.mxu0 0
        %687 = vmatpush1.bf16.msra.mxu0 0
        %688 = vmatprep.subr.bf16.mxu0 0
        %689 = vmatpush1.bf16.msra.mxu0 0
        %690 = vmatprep.subr.bf16.mxu0 0
        %691 = vmatpush1.bf16.msra.mxu0 0
        %692 = vmatprep.mubr.bf16.mxu0 0
        %693 = vmatmul.mubr.bf16.gmra.mrb[0].mxu0 %v652
        %v694 = vpop.f32.mrb[0].mxu0
        %v695 = vadd.f32 %v648, %v694
        %v696 = vpop.f32.mrb[0].mxu0
        %v697 = vadd.f32 %v648, %v696
        %v698 = vpop.f32.mrb[0].mxu0
        %v699 = vpop.f32.mrb[0].mxu0
        %700 = vdwg.mxu0
        %v701 = vmax.f32 %v695, 0.0
        %v702 = vmax.f32 %v697, 0.0
        %v703 = vld [vmem:[%s6] sm:$0xf]
        %v704 = vpack.c.bf16 %v327, %v327
        %v705 = vpack.c.bf16 %v329, %v329
        %v706 = vld [vmem:[%s7] sm:$0xff]
        %708 = vset.pattern.permute.xlu0 0
        %709 = vperm.xlu0 %708, %v706
        %v710 = vpop.permute.xlu0 %709
        %vm712 = vcmask 31744
        %v714 = vsel %vm712, %v703, 0
        %v717 = vsel %vm519, %v704, 0
        %v720 = vsel %vm519, %v705, 0
        %722 = vmatprep.subr.bf16.mxu0 %v720
        %723 = vmatpush1.bf16.msra.mxu0 %v717
        %724 = vmatprep.subr.bf16.mxu0 0
        %725 = vmatpush1.bf16.msra.mxu0 0
        %726 = vmatprep.subr.bf16.mxu0 0
        %727 = vmatpush1.bf16.msra.mxu0 0
        %728 = vmatprep.subr.bf16.mxu0 0
        %729 = vmatpush1.bf16.msra.mxu0 0
        %730 = vmatprep.subr.bf16.mxu0 0
        %731 = vmatpush1.bf16.msra.mxu0 0
        %732 = vmatprep.subr.bf16.mxu0 0
        %733 = vmatpush1.bf16.msra.mxu0 0
        %734 = vmatprep.subr.bf16.mxu0 0
        %735 = vmatpush1.bf16.msra.mxu0 0
        %736 = vmatprep.subr.bf16.mxu0 0
        %737 = vmatpush1.bf16.msra.mxu0 0
        %738 = vmatprep.subr.bf16.mxu0 0
        %739 = vmatpush1.bf16.msra.mxu0 0
        %740 = vmatprep.subr.bf16.mxu0 0
        %741 = vmatpush1.bf16.msra.mxu0 0
        %742 = vmatprep.subr.bf16.mxu0 0
        %743 = vmatpush1.bf16.msra.mxu0 0
        %744 = vmatprep.subr.bf16.mxu0 0
        %745 = vmatpush1.bf16.msra.mxu0 0
        %746 = vmatprep.subr.bf16.mxu0 0
        %747 = vmatpush1.bf16.msra.mxu0 0
        %748 = vmatprep.subr.bf16.mxu0 0
        %749 = vmatpush1.bf16.msra.mxu0 0
        %750 = vmatprep.subr.bf16.mxu0 0
        %751 = vmatpush1.bf16.msra.mxu0 0
        %752 = vmatprep.subr.bf16.mxu0 0
        %753 = vmatpush1.bf16.msra.mxu0 0
        %754 = vmatprep.mubr.bf16.mxu0 0
        %755 = vmatmul.mubr.bf16.gmra.mrb[0].mxu0 %v714
        %v756 = vpop.f32.mrb[0].mxu0
        %v757 = vadd.f32 %v710, %v756
        %v758 = vpop.f32.mrb[0].mxu0
        %v759 = vadd.f32 %v710, %v758
        %v760 = vpop.f32.mrb[0].mxu0
        %v761 = vpop.f32.mrb[0].mxu0
        %762 = vdwg.mxu0
        %v763 = vadd.f32 %v701, %v757
        %v764 = vadd.f32 %v702, %v759
        %v765 = vmax.f32 %v763, 0.0
        %v766 = vmax.f32 %v764, 0.0
        %767 = vst [vmem:[%s321] sm:$0xff] %v765
        %768 = vst [vmem:[%s321 + $0x8] sm:$0xff] %v766
        %s769 = sand.u32 %s206, 1
        %s770 = scalar_lea.sflag [#allocation4], %s769
        %s771 = sand.u32 %s206, 1
        %s772 = smul.addr %s771, 16
        %s773 = scalar_lea.vmem [#allocation5], %s772
        // Predicated region
        $region57: #{tpu_custom_call.1} parent=51 // pred_check
          %p774 = pneg %p216
        $region58: #{tpu_custom_call.1} parent=51 // pred_check_branch
          %776 = sbr.rel (%p774) target = $region60
        $region59: #{tpu_custom_call.1} parent=51 // pred_region
          %s778 = ssub.s32 256, 256
          %779 = vsyncadd %s770, %s778
          %s780 = smul.addr %s25, 2
          %s781 = smul.addr %s780, 128
          %s782 = scalar_lea.hbm %s8, %s781
          %s784 = sshll.u32 %s773, 4
          %s785 = int_to_ptr.vmem [resolvable:$true] %s784
          %787 = dma.vmem_to_hbm [thread:$0]  %s785, 256, %s782, %s770
        $region60: #{tpu_custom_call.1} parent=51 // pred_fallthru
          _
      $region52: #{tpu_custom_call.1} parent=5 // pred_fallthru
        _
      %p788 = scmp.le.s32.totalorder 2, %s20
      // Predicated region
      $region61: #{tpu_custom_call.1} parent=5 // pred_check
        %p789 = pneg %p788
      $region62: #{tpu_custom_call.1} parent=5 // pred_check_branch
        %791 = sbr.rel (%p789) target = $region64
      $region63: #{tpu_custom_call.1} parent=5 // pred_region
        %s792 = ssub.s32 %s20, 2
        // Predicated region
        $region65: #{tpu_custom_call.1} parent=63 // pred_check
          %p793 = pneg %p222
        $region66: #{tpu_custom_call.1} parent=63 // pred_check_branch
          %795 = sbr.rel (%p793) target = $region68
        $region67: #{tpu_custom_call.1} parent=63 // pred_region
          %s796 = sand.u32 %s207, 1
          %s797 = scalar_lea.sflag [#allocation4], %s796
          %s798 = sand.u32 %s207, 1
          %s799 = smul.addr %s798, 16
          %s800 = scalar_lea.vmem [#allocation5], %s799
          %801 = dma.done %s797, 256
        $region68: #{tpu_custom_call.1} parent=63 // pred_fallthru
          _
      $region64: #{tpu_custom_call.1} parent=5 // pred_fallthru
        _
    $region6: #{tpu_custom_call.1} parent=1 // loop_footer
      %s24 = sadd.s32 1, %s20
    $region7: #{tpu_custom_call.1} parent=1 // loop_footer_branch
      %19 = sbr.rel target = $region3
    $region8: #{tpu_custom_call.1} parent=1 // loop_exit
      _
    %802 = vsyncpa [#allocation3], 1
    %s803 = scalar_lea.sflag [#allocation3], 1
    %804 = vsyncpa %s803, 1
    %805 = vsyncpa [#allocation4], 1
    %s806 = scalar_lea.sflag [#allocation4], 1
    %807 = vsyncpa %s806, 1

</llo_original>
